<compile_context>
chip_gen: v6e
topology: v6e:2x2x1
jax: 0.10.0
libtpu: 0.0.40
codegen_flags: <defaults>
</compile_context>

<pallas_src>
import functools

import jax
import jax.numpy as jnp
from jax import lax
from jax.experimental import pallas as pl
from jax.experimental.pallas import tpu as pltpu

LANES = 128


def _lq_bernoulli_kernel(pred_ref, targ_ref, acc_ref, *, omq, inv_omq,
                         tile_rows, chunk_rows, n_full_rows, rem_lanes,
                         needs_mask):
    """Accumulate the per-tile loss sum into a resident (8, 128) f32 slab."""

    # Zero the resident accumulator block at the start of the reduction sweep.
    @pl.when(pl.program_id(0) == 0)
    def _():
        acc_ref[...] = jnp.zeros_like(acc_ref)

    tile_row0 = pl.program_id(0) * tile_rows          # global row of tile start
    n_chunks = tile_rows // chunk_rows

    def chunk_body(do_mask):
        def body(c, acc):
            r0 = pl.multiple_of(c * chunk_rows, chunk_rows)
            pred = pred_ref[pl.ds(r0, chunk_rows), :].astype(jnp.float32)
            targ = targ_ref[pl.ds(r0, chunk_rows), :].astype(jnp.float32)

            # Numerically stable log-sigmoid, sharing exp(-|pred|):
            #   log p     = -(max(-pred, 0) + log1p(exp(-|pred|)))
            #   log (1-p) = -(max( pred, 0) + log1p(exp(-|pred|)))
            e = jnp.exp(-jnp.abs(pred))                       # EUP
            lse = jnp.log1p(e)                                # EUP
            log_p = -(lse + jnp.maximum(-pred, 0.0))
            log_1mp = -(lse + jnp.maximum(pred, 0.0))

            # L_q(x) = (x**(1-q) - 1)/(1-q) = (exp((1-q)*log x) - 1) * (1/(1-q))
            lq_p = (jnp.exp(omq * log_p) - 1.0) * inv_omq     # EUP
            lq_1mp = (jnp.exp(omq * log_1mp) - 1.0) * inv_omq  # EUP
            loss = -(targ * lq_p + (1.0 - targ) * lq_1mp)

            if do_mask:
                # Row/lane validity test (no flat index -> no int32 overflow):
                # rows < n_full_rows are fully valid; the single ragged row
                # (== n_full_rows) is valid for lanes < rem_lanes.
                row = (tile_row0 + r0
                       + lax.broadcasted_iota(jnp.int32, loss.shape, 0))
                lane = lax.broadcasted_iota(jnp.int32, loss.shape, 1)
                valid = (row < n_full_rows) | ((row == n_full_rows)
                                               & (lane < rem_lanes))
                loss = jnp.where(valid, loss, 0.0)

            # VPU-only fold onto an (8, 128) partial-sum slab; the cross-lane
            # reduce happens once, outside the kernel.
            folded = loss.reshape(chunk_rows // 8, 8, LANES).sum(axis=0)
            return acc + folded
        return body

    zero = jnp.zeros((8, LANES), jnp.float32)

    if needs_mask:
        # Only the tile that touches the valid/invalid boundary pays the mask.
        is_boundary = tile_row0 + tile_rows > n_full_rows

        @pl.when(is_boundary)
        def _():
            acc_ref[...] += lax.fori_loop(0, n_chunks, chunk_body(True), zero)

        @pl.when(jnp.logical_not(is_boundary))
        def _():
            acc_ref[...] += lax.fori_loop(0, n_chunks, chunk_body(False), zero)
    else:
        acc_ref[...] += lax.fori_loop(0, n_chunks, chunk_body(False), zero)


def _lq_loss_elementwise_xla(predicted, target, q):
    """Reference-style elementwise loss (used only for tiny-input fallback)."""
    p = jax.nn.sigmoid(predicted.astype(jnp.float32))
    t = target.astype(jnp.float32)
    omq = 1.0 - q
    lq = lambda x: (x ** omq - 1.0) / omq
    return -(t * lq(p) + (1.0 - t) * lq(1.0 - p))


def lq_bernoulli_with_logits_loss(predicted, target, weight=None, q=1.0,
                                  reduction="mean", *, max_tile_rows=4096,
                                  chunk_rows=256):
    """Pallas implementation of LqBernoulliWithLogitsLoss (weight=None)."""
    if weight is not None:
        # TODO(synk): per-element weight tensor not wired through the reduction.
        raise NotImplementedError("weight is not supported")
    if q == 1.0:
        raise ValueError("q == 1 is singular in L_q (as in the reference); use q != 1")
    if reduction not in ("mean", "sum"):
        # TODO(synk): 'none' reduction (elementwise loss map) not implemented.
        raise NotImplementedError("only 'mean' and 'sum' reductions supported")
    assert predicted.shape == target.shape

    n_elems = int(predicted.size)
    omq = float(1.0 - q)
    inv_omq = float(1.0 / omq)

    n_full_rows = n_elems // LANES        # fully-valid 128-lane rows
    rem_lanes = n_elems % LANES           # valid lanes in the ragged last row
    rows_2d = n_full_rows + (1 if rem_lanes else 0)

    if rows_2d < 8:
        # < ~1K elements: not worth a kernel launch; tiny pure-XLA path.
        total = jnp.sum(_lq_loss_elementwise_xla(predicted, target, q))
    else:
        pred_flat = predicted.reshape(-1)
        targ_flat = target.reshape(-1)
        if rem_lanes:
            # TODO(synk): the <128-element ragged tail forces a pad copy of the
            # flat arrays; could be split off into a tiny XLA epilogue instead.
            pad = LANES - rem_lanes
            pred_flat = jnp.pad(pred_flat, (0, pad))
            targ_flat = jnp.pad(targ_flat, (0, pad))
        pred2d = pred_flat.reshape(rows_2d, LANES)   # zero-copy when rem_lanes == 0
        targ2d = targ_flat.reshape(rows_2d, LANES)

        # DMA tile: as large as possible (amortize ~0.35us/step), never larger
        # than the array (only the trailing block may be partial), and an exact
        # multiple of the in-kernel chunk so the fori_loop divides evenly.
        tile_rows = min(max_tile_rows, rows_2d)
        if tile_rows >= chunk_rows:
            tile_rows = (tile_rows // chunk_rows) * chunk_rows
            c_rows = chunk_rows
        elif tile_rows >= 32:
            tile_rows = (tile_rows // 32) * 32
            c_rows = tile_rows
        else:
            tile_rows = (tile_rows // 8) * 8
            c_rows = tile_rows

        n_tiles = pl.cdiv(rows_2d, tile_rows)
        needs_mask = (rem_lanes != 0) or (rows_2d % tile_rows != 0)

        kernel = functools.partial(
            _lq_bernoulli_kernel, omq=omq, inv_omq=inv_omq,
            tile_rows=tile_rows, chunk_rows=c_rows,
            n_full_rows=n_full_rows, rem_lanes=rem_lanes, needs_mask=needs_mask)

        partials = pl.pallas_call(
            kernel,
            out_shape=jax.ShapeDtypeStruct((8, LANES), jnp.float32),
            grid_spec=pltpu.PrefetchScalarGridSpec(
                num_scalar_prefetch=0,
                grid=(n_tiles,),
                in_specs=[
                    pl.BlockSpec((tile_rows, LANES), lambda i: (i, 0)),
                    pl.BlockSpec((tile_rows, LANES), lambda i: (i, 0)),
                ],
                out_specs=pl.BlockSpec((8, LANES), lambda i: (0, 0)),
            ),
            compiler_params=pltpu.CompilerParams(
                # Single reduction axis; the output block is resident across it.
                # TODO(synk): on v7x, shard this axis across the two TensorCores
                # (CORE_PARALLEL / pl.core_map) once 2-TC sharding is verified.
                dimension_semantics=("arbitrary",),
                # Raise v5e's 16 MiB default scoped VMEM; ~10-12 MiB live at
                # tile_rows=4096 (2 inputs x 2 buffers x 2 MiB + chunk temps).
                vmem_limit_bytes=32 * 1024 * 1024,
            ),
        )(pred2d, targ2d)

        total = jnp.sum(partials)        # tiny (8x128) cross-lane reduce in XLA

    if reduction == "sum":
        return total
    return total / jnp.float32(n_elems)


def _reference(predicted, target, q):
    p = jax.nn.sigmoid(predicted.astype(jnp.float32))
    t = target.astype(jnp.float32)
    omq = 1.0 - q
    lq = lambda x: (x ** omq - 1.0) / omq
    loss = -(t * lq(p) + (1.0 - t) * lq(1.0 - p))
    return loss.mean()


if __name__ == "__main__":
    key = jax.random.PRNGKey(0)
    k1, k2 = jax.random.split(key)

    # Small NCHW shapes: batch=2, channels=4, spatial=16x16.
    shape = (2, 4, 16, 16)
    predicted = jax.random.normal(k1, shape, dtype=jnp.float32)
    target = (jax.random.uniform(k2, shape) > 0.5).astype(jnp.float32)

    q = 0.8  # q -> 1 recovers BCE; q = 1 exactly is singular (as in the reference).
    out = lq_bernoulli_with_logits_loss(predicted, target, q=q, reduction="mean")
    out = jax.block_until_ready(out)

    ref = _reference(predicted, target, q)
    assert jnp.allclose(out, ref, rtol=1e-5, atol=1e-5), (out, ref)

    print("KERNEL_OK")
</pallas_src>

<mosaic_0001>
module attributes {stable_mosaic.version = 11 : i64} {
  func.func @_lq_bernoulli_kernel(%arg0: i32, %arg1: memref<16x128xf32, #tpu.memory_space<vmem>>, %arg2: memref<16x128xf32, #tpu.memory_space<vmem>>, %arg3: memref<8x128xf32, #tpu.memory_space<vmem>>) attributes {dimension_semantics = [#tpu.dimension_semantics<arbitrary>], iteration_bounds = array<i64: 1>, scalar_prefetch = 0 : i64, scratch_operands = 0 : i64, tpu.core_type = #tpu.core_type<tc>, window_params = [{transform_indices = @transform_0, window_bounds = array<i64: 16, 128>}, {transform_indices = @transform_1, window_bounds = array<i64: 16, 128>}, {pipeline_mode = #tpu.pipeline_mode<synchronous>, transform_indices = @transform_2, window_bounds = array<i64: 8, 128>}]} {
    %c0_i32 = arith.constant 0 : i32
    %0 = arith.cmpi eq, %arg0, %c0_i32 : i32
    %1 = arith.extui %0 : i1 to i32
    %c0_i32_0 = arith.constant 0 : i32
    %2 = arith.cmpi ne, %1, %c0_i32_0 : i32
    scf.if %2 {
      %cst_22 = arith.constant 0.000000e+00 : f32
      %54 = vector.broadcast %cst_22 : f32 to vector<8x128xf32>
      %c0_23 = arith.constant 0 : index
      %c0_24 = arith.constant 0 : index
      %55 = vector.load %arg3[%c0_23, %c0_24] : memref<8x128xf32, #tpu.memory_space<vmem>>, vector<8x128xf32>
      tpu.vector_store %arg3[%c0_23, %c0_24], %54 {strides = array<i32>} : memref<8x128xf32, #tpu.memory_space<vmem>>, vector<8x128xf32>,
    } else {
    }
    %cst = arith.constant 0.000000e+00 : f32
    %3 = vector.broadcast %cst : f32 to vector<8x128xf32>
    %c0 = arith.constant 0 : index
    %c0_1 = arith.constant 0 : index
    %4 = vector.load %arg3[%c0, %c0_1] : memref<8x128xf32, #tpu.memory_space<vmem>>, vector<8x128xf32>
    %c0_i32_2 = arith.constant 0 : i32
    %c16_i32 = arith.constant 16 : i32
    %5 = arith.muli %c0_i32_2, %c16_i32 : i32
    %6 = tpu.assume_multiple %5, 16 : i32
    %7 = arith.index_cast %6 : i32 to index
    %c0_3 = arith.constant 0 : index
    %8 = vector.load %arg1[%7, %c0_3] : memref<16x128xf32, #tpu.memory_space<vmem>>, vector<16x128xf32>
    %9 = arith.index_cast %6 : i32 to index
    %c0_4 = arith.constant 0 : index
    %10 = vector.load %arg2[%9, %c0_4] : memref<16x128xf32, #tpu.memory_space<vmem>>, vector<16x128xf32>
    %11 = math.absf %8 : vector<16x128xf32>
    %cst_5 = arith.constant 0.000000e+00 : f32
    %12 = vector.broadcast %cst_5 : f32 to vector<16x128xf32>
    %13 = arith.subf %12, %11 : vector<16x128xf32>
    %14 = math.exp %13 : vector<16x128xf32>
    %15 = math.log1p %14 : vector<16x128xf32>
    %cst_6 = arith.constant 0.000000e+00 : f32
    %16 = vector.broadcast %cst_6 : f32 to vector<16x128xf32>
    %17 = arith.subf %16, %8 : vector<16x128xf32>
    %cst_7 = arith.constant 0.000000e+00 : f32
    %18 = vector.broadcast %cst_7 : f32 to vector<16x128xf32>
    %19 = arith.maximumf %17, %18 : vector<16x128xf32>
    %20 = arith.addf %15, %19 : vector<16x128xf32>
    %cst_8 = arith.constant 0.000000e+00 : f32
    %21 = vector.broadcast %cst_8 : f32 to vector<16x128xf32>
    %22 = arith.subf %21, %20 : vector<16x128xf32>
    %cst_9 = arith.constant 0.000000e+00 : f32
    %23 = vector.broadcast %cst_9 : f32 to vector<16x128xf32>
    %24 = arith.maximumf %8, %23 : vector<16x128xf32>
    %25 = arith.addf %15, %24 : vector<16x128xf32>
    %cst_10 = arith.constant 0.000000e+00 : f32
    %26 = vector.broadcast %cst_10 : f32 to vector<16x128xf32>
    %27 = arith.subf %26, %25 : vector<16x128xf32>
    %cst_11 = arith.constant 2.000000e-01 : f32
    %28 = vector.broadcast %cst_11 : f32 to vector<16x128xf32>
    %29 = arith.mulf %28, %22 : vector<16x128xf32>
    %30 = math.exp %29 : vector<16x128xf32>
    %cst_12 = arith.constant 1.000000e+00 : f32
    %31 = vector.broadcast %cst_12 : f32 to vector<16x128xf32>
    %32 = arith.subf %30, %31 : vector<16x128xf32>
    %cst_13 = arith.constant 5.000000e+00 : f32
    %33 = vector.broadcast %cst_13 : f32 to vector<16x128xf32>
    %34 = arith.mulf %32, %33 : vector<16x128xf32>
    %cst_14 = arith.constant 2.000000e-01 : f32
    %35 = vector.broadcast %cst_14 : f32 to vector<16x128xf32>
    %36 = arith.mulf %35, %27 : vector<16x128xf32>
    %37 = math.exp %36 : vector<16x128xf32>
    %cst_15 = arith.constant 1.000000e+00 : f32
    %38 = vector.broadcast %cst_15 : f32 to vector<16x128xf32>
    %39 = arith.subf %37, %38 : vector<16x128xf32>
    %cst_16 = arith.constant 5.000000e+00 : f32
    %40 = vector.broadcast %cst_16 : f32 to vector<16x128xf32>
    %41 = arith.mulf %39, %40 : vector<16x128xf32>
    %42 = arith.mulf %10, %34 : vector<16x128xf32>
    %cst_17 = arith.constant 1.000000e+00 : f32
    %43 = vector.broadcast %cst_17 : f32 to vector<16x128xf32>
    %44 = arith.subf %43, %10 : vector<16x128xf32>
    %45 = arith.mulf %44, %41 : vector<16x128xf32>
    %46 = arith.addf %42, %45 : vector<16x128xf32>
    %cst_18 = arith.constant 0.000000e+00 : f32
    %47 = vector.broadcast %cst_18 : f32 to vector<16x128xf32>
    %48 = arith.subf %47, %46 : vector<16x128xf32>
    %49 = vector.shape_cast %48 : vector<16x128xf32> to vector<2x8x128xf32>
    %cst_19 = arith.constant dense<0.000000e+00> : vector<8x128xf32>
    %50 = vector.multi_reduction <add>, %49, %cst_19 [0] : vector<2x8x128xf32> to vector<8x128xf32>
    %51 = arith.addf %3, %50 : vector<8x128xf32>
    %c1_i32 = arith.constant 1 : i32
    %52 = arith.addf %4, %51 : vector<8x128xf32>
    %c0_20 = arith.constant 0 : index
    %c0_21 = arith.constant 0 : index
    %53 = vector.load %arg3[%c0_20, %c0_21] : memref<8x128xf32, #tpu.memory_space<vmem>>, vector<8x128xf32>
    tpu.vector_store %arg3[%c0_20, %c0_21], %52 {strides = array<i32>} : memref<8x128xf32, #tpu.memory_space<vmem>>, vector<8x128xf32>,
    return
  }
  func.func @transform_0(%arg0: i32) -> (i32, i32) {
    %c0_i32 = arith.constant 0 : i32
    %c0_i32_0 = arith.constant 0 : i32
    return %arg0, %c0_i32 : i32, i32
  }
  func.func @transform_1(%arg0: i32) -> (i32, i32) {
    %c0_i32 = arith.constant 0 : i32
    %c0_i32_0 = arith.constant 0 : i32
    return %arg0, %c0_i32 : i32, i32
  }
  func.func @transform_2(%arg0: i32) -> (i32, i32) {
    %c0_i32 = arith.constant 0 : i32
    %c0_i32_0 = arith.constant 0 : i32
    %c0_i32_1 = arith.constant 0 : i32
    return %c0_i32, %c0_i32_0 : i32, i32
  }
}

</mosaic_0001>

<llo_original>
// kernel: tpu_custom_call.1
$region0: #{tpu_custom_call.1}
  #allocation0 [shape = 'u32[]', space=smem, size = 0x4, offset = 0x4, fixed_abs, tag = 'smem constant byte address 0x4 - core index']
  #allocation1 [shape = 'u32[144,128]{1,0:T(1,128)}', space=vmem, size = 0x12000, scoped, tag = 'internal scratch']
  %s0 = inlined_call_operand.hbm [shape: f32[16,128], index: 0, kind: input, shape index: {}]
  %s1 = inlined_call_operand.hbm [shape: f32[16,128], index: 1, kind: input, shape index: {}]
  %s2 = inlined_call_operand.hbm [shape: f32[8,128], index: 2, kind: output, shape index: {}]
  %s3 = sld [smem:[#allocation0]]
  $region30: #{tpu_custom_call.1} parent=0
    _
  %s5 = ssub.s32 1, %s3
  %s6 = scalar_select 0, %s5, %s3
  $region1: #{tpu_custom_call.1} parent=0
    #allocation2 [shape = 'u8[8192]{0}', space=vmem, size = 0x2000, scoped, tag = 'input window, operand 0, single buffered']
    #allocation3 [shape = 's32[1]{0}', space=sflag, size = 0x4, scoped, tag = 'scoped memory for tpu_custom_call.1']
    #allocation4 [shape = 's32[1]{0}', space=sflag, size = 0x4, scoped, tag = 'scoped memory for tpu_custom_call.1']
    #allocation5 [shape = 'u8[8192]{0}', space=vmem, size = 0x2000, scoped, tag = 'input window, operand 1, single buffered']
    #allocation6 [shape = 's32[1]{0}', space=sflag, size = 0x4, scoped, tag = 'scoped memory for tpu_custom_call.1']
    #allocation7 [shape = 'u8[4096]{0}', space=vmem, size = 0x1000, scoped, tag = 'output window, operand 0, single buffered']
    %7 = vsyncpa [#allocation3], 0
    %8 = vsyncpa [#allocation6], 0
    %9 = vsyncpa [#allocation4], 0
    // Predicated region
    $region2: #{tpu_custom_call.1} parent=1 // pred_check
      _
    $region3: #{tpu_custom_call.1} parent=1 // pred_check_branch
      %11 = sbr.rel (0) target = $region5
    $region4: #{tpu_custom_call.1} parent=1 // pred_region
      %s13 = ssub.s32 256, 256
      %14 = vsyncadd [#allocation3], %s13
      %s15 = sshll.u32 [#allocation2], 4
      %s16 = int_to_ptr.vmem [resolvable:$true] %s15
      %21 = dma.hbm_to_vmem [thread:$0]  %s0, 256, %s16, [#allocation3], 128, 128, 8
    $region5: #{tpu_custom_call.1} parent=1 // pred_fallthru
      _
    // Predicated region
    $region6: #{tpu_custom_call.1} parent=1 // pred_check
      _
    $region7: #{tpu_custom_call.1} parent=1 // pred_check_branch
      %23 = sbr.rel (0) target = $region9
    $region8: #{tpu_custom_call.1} parent=1 // pred_region
      %s25 = ssub.s32 256, 256
      %26 = vsyncadd [#allocation6], %s25
      %s27 = sshll.u32 [#allocation5], 4
      %s28 = int_to_ptr.vmem [resolvable:$true] %s27
      %33 = dma.hbm_to_vmem [thread:$0]  %s1, 256, %s28, [#allocation6], 128, 128, 8
    $region9: #{tpu_custom_call.1} parent=1 // pred_fallthru
      _
    // Predicated region
    $region10: #{tpu_custom_call.1} parent=1 // pred_check
      _
    $region11: #{tpu_custom_call.1} parent=1 // pred_check_branch
      %35 = sbr.rel (0) target = $region13
    $region12: #{tpu_custom_call.1} parent=1 // pred_region
      %36 = dma.done [#allocation3], 256
    $region13: #{tpu_custom_call.1} parent=1 // pred_fallthru
      _
    // Predicated region
    $region14: #{tpu_custom_call.1} parent=1 // pred_check
      _
    $region15: #{tpu_custom_call.1} parent=1 // pred_check_branch
      %38 = sbr.rel (0) target = $region17
    $region16: #{tpu_custom_call.1} parent=1 // pred_region
      %39 = dma.done [#allocation6], 256
    $region17: #{tpu_custom_call.1} parent=1 // pred_fallthru
      _
    %p40 = scmp.eq.s32.totalorder 0, 0
    // Predicated region
    $region18: #{tpu_custom_call.1} parent=1 // pred_check
      %p41 = pneg %p40
    $region19: #{tpu_custom_call.1} parent=1 // pred_check_branch
      %43 = sbr.rel (%p41) target = $region21
    $region20: #{tpu_custom_call.1} parent=1 // pred_region
      %44 = vst [vmem:[#allocation7] sm:$0xff] 0.0
    $region21: #{tpu_custom_call.1} parent=1 // pred_fallthru
      _
    %v45 = vld [vmem:[#allocation7] sm:$0xff]
    %v46 = vld [vmem:[#allocation2] sm:$0xff]
    %v47 = vld [vmem:[#allocation2 + $0x8] sm:$0xff]
    %v48 = vld [vmem:[#allocation5] sm:$0xff]
    %v49 = vld [vmem:[#allocation5 + $0x8] sm:$0xff]
    %v50 = vand.u32 2147483647, %v46
    %v51 = vand.u32 2147483647, %v47
    %v52 = vsub.f32 0.0, %v50
    %v53 = vsub.f32 0.0, %v51
    %v54 = vmul.f32 %v52, 1.442695
    %v55 = vpow.pop %v54
    %v56 = vmul.f32 %v53, 1.442695
    %v57 = vpow.pop %v56
    %v58 = vadd.f32 %v55, 1.0
    %v59 = vlog2.pop %v58
    %v60 = vmul.f32 %v59, 0.6931472
    %v61 = vmul.f32 -0.5, %v55
    %v62 = vadd.f32 %v61, 1.0
    %v63 = vmul.f32 %v62, %v55
    %v64 = vand.u32 2147483647, %v55
    %vm65 = vcmp.lt.f32.partialorder %v64, 0.0004427343
    %v66 = vsel %vm65, %v63, %v60
    %v67 = vadd.f32 %v57, 1.0
    %v68 = vlog2.pop %v67
    %v69 = vmul.f32 %v68, 0.6931472
    %v70 = vmul.f32 -0.5, %v57
    %v71 = vadd.f32 %v70, 1.0
    %v72 = vmul.f32 %v71, %v57
    %v73 = vand.u32 2147483647, %v57
    %vm74 = vcmp.lt.f32.partialorder %v73, 0.0004427343
    %v75 = vsel %vm74, %v72, %v69
    %v76 = vsub.f32 0.0, %v46
    %v77 = vsub.f32 0.0, %v47
    %v78 = vmax.f32 %v76, 0.0
    %v79 = vmax.f32 %v77, 0.0
    %v80 = vadd.f32 %v66, %v78
    %v81 = vadd.f32 %v75, %v79
    %v82 = vsub.f32 0.0, %v80
    %v83 = vsub.f32 0.0, %v81
    %v84 = vmax.f32 %v46, 0.0
    %v85 = vmax.f32 %v47, 0.0
    %v86 = vadd.f32 %v66, %v84
    %v87 = vadd.f32 %v75, %v85
    %v88 = vsub.f32 0.0, %v86
    %v89 = vsub.f32 0.0, %v87
    %v90 = vmul.f32 %v82, 0.2
    %v91 = vmul.f32 %v83, 0.2
    %v92 = vmul.f32 %v90, 1.442695
    %v93 = vpow.pop %v92
    %v94 = vmul.f32 %v91, 1.442695
    %v95 = vpow.pop %v94
    %v96 = vsub.f32 %v93, 1.0
    %v97 = vsub.f32 %v95, 1.0
    %v98 = vmul.f32 %v96, 5.0
    %v99 = vmul.f32 %v97, 5.0
    %v100 = vmul.f32 %v88, 0.2
    %v101 = vmul.f32 %v89, 0.2
    %v102 = vmul.f32 %v100, 1.442695
    %v103 = vpow.pop %v102
    %v104 = vmul.f32 %v101, 1.442695
    %v105 = vpow.pop %v104
    %v106 = vsub.f32 %v103, 1.0
    %v107 = vsub.f32 %v105, 1.0
    %v108 = vmul.f32 %v106, 5.0
    %v109 = vmul.f32 %v107, 5.0
    %v110 = vmul.f32 %v48, %v98
    %v111 = vmul.f32 %v49, %v99
    %v112 = vsub.f32 1.0, %v48
    %v113 = vsub.f32 1.0, %v49
    %v114 = vmul.f32 %v112, %v108
    %v115 = vmul.f32 %v113, %v109
    %v116 = vadd.f32 %v110, %v114
    %v117 = vadd.f32 %v111, %v115
    %v118 = vsub.f32 0.0, %v116
    %v119 = vsub.f32 0.0, %v117
    %v120 = vadd.f32 %v118, %v119
    %v121 = vadd.f32 %v120, 0.0
    %v122 = vadd.f32 %v45, %v121
    %123 = vst [vmem:[#allocation7] sm:$0xff] %v122
    // Predicated region
    $region22: #{tpu_custom_call.1} parent=1 // pred_check
      _
    $region23: #{tpu_custom_call.1} parent=1 // pred_check_branch
      %125 = sbr.rel (0) target = $region25
    $region24: #{tpu_custom_call.1} parent=1 // pred_region
      %s127 = ssub.s32 128, 128
      %128 = vsyncadd [#allocation4], %s127
      %s130 = sshll.u32 [#allocation7], 4
      %s131 = int_to_ptr.vmem [resolvable:$true] %s130
      %133 = dma.vmem_to_hbm [thread:$0]  %s131, 128, %s2, [#allocation4]
    $region25: #{tpu_custom_call.1} parent=1 // pred_fallthru
      _
    // Predicated region
    $region26: #{tpu_custom_call.1} parent=1 // pred_check
      _
    $region27: #{tpu_custom_call.1} parent=1 // pred_check_branch
      %135 = sbr.rel (0) target = $region29
    $region28: #{tpu_custom_call.1} parent=1 // pred_region
      %136 = dma.done [#allocation4], 128
    $region29: #{tpu_custom_call.1} parent=1 // pred_fallthru
      _
    %137 = vsyncpa [#allocation3], 1
    %138 = vsyncpa [#allocation6], 1
    %139 = vsyncpa [#allocation4], 1

</llo_original>
